<compile_context>
chip_gen: v5e
topology: v5e:2x2
jax: 0.10.0
libtpu: 0.0.40
codegen_flags: <defaults>
</compile_context>

<pallas_src>
import jax
import jax.numpy as jnp
from jax.experimental import pallas as pl
from jax.experimental.pallas import tpu as pltpu


def _embed_kernel(ids_ref, table_ref, out_ref):
    # ids_ref:   (TN, 1) int32   -- flattened position ids for this tile
    # table_ref: (V, D)  float   -- full embedding table, resident in VMEM
    # out_ref:   (TN, D) float   -- lane-dense output tile
    ids = ids_ref[...]                                   # (TN, 1)
    tn = ids.shape[0]
    v = table_ref.shape[0]
    # one_hot[n, j] = 1 where ids[n] == j; 0/1 exact in f32 and bf16.
    col = jax.lax.broadcasted_iota(jnp.int32, (tn, v), 1)
    one_hot = (ids == col).astype(table_ref.dtype)       # (TN, V)
    out_ref[...] = jnp.dot(
        one_hot, table_ref[...], preferred_element_type=jnp.float32
    ).astype(out_ref.dtype)


def _round_up(x, m):
    return ((x + m - 1) // m) * m


def _build_embed_call(n, v, d, tn, out_dtype, vmem_limit_bytes, table_pipeline_mode):
    """Builds the pallas_call for a flat (n,) id vector -> (n, d) output."""
    if table_pipeline_mode is not None:
        table_spec = pl.BlockSpec(
            (v, d), lambda i: (0, 0), pipeline_mode=table_pipeline_mode
        )
    else:
        table_spec = pl.BlockSpec((v, d), lambda i: (0, 0))

    return pl.pallas_call(
        _embed_kernel,
        out_shape=jax.ShapeDtypeStruct((n, d), out_dtype),
        grid_spec=pltpu.PrefetchScalarGridSpec(
            num_scalar_prefetch=0,
            grid=(pl.cdiv(n, tn),),
            in_specs=[
                # Per-tile index column (ragged last block read-pads; fine).
                pl.BlockSpec((tn, 1), lambda i: (i, 0)),
                # Full table, same block every step (VMEM-resident).
                table_spec,
            ],
            # Ragged last block: Pallas masks the out-of-bounds store rows.
            out_specs=pl.BlockSpec((tn, d), lambda i: (i, 0)),
        ),
        compiler_params=pltpu.CompilerParams(
            dimension_semantics=("parallel",),
            vmem_limit_bytes=vmem_limit_bytes,
        ),
    )


def learned_positional_embedding(x, table, *, tile_n=512, single_buffer_table=True):
    """Pallas equivalent of nn.Embedding(max_positions, embed_dim)(x).

    x:     (B, S) integer indices in [0, max_positions)
    table: (max_positions, embed_dim) embedding weights (embed_dim ideally a
           multiple of 128 for lane-dense stores)
    returns (B, S, embed_dim) in the table dtype
    """
    B, S = x.shape
    V, D = table.shape
    N = B * S

    # ---- tile-size selection -------------------------------------------
    # Large tiles for roofline; shrink for tiny N (sublane multiple of 8).
    tn = min(tile_n, _round_up(N, 8))
    tn = _round_up(tn, 8)
    # Guarantee >= 2 grid steps when N is big enough so both v7x TensorCores
    # participate via the "parallel" grid axis (256-aligned to keep the MXU
    # rows full if the one-hot matmul ever matters).
    if N >= 512:
        tn = min(tn, _round_up(pl.cdiv(N, 2), 256))

    # ---- VMEM budget -----------------------------------------------------
    itemsize = jnp.dtype(table.dtype).itemsize
    vmem_need = (
        2 * tn * D * itemsize      # double-buffered output tile
        + 2 * tn * 4               # double-buffered ids column
        + 2 * V * D * itemsize     # table (worst case: default double-buffer)
    )
    vmem_limit = int(min(max(vmem_need + (2 << 20), 32 << 20), 100 << 20))

    ids_2d = x.reshape(N, 1).astype(jnp.int32)

    def _run(table_mode):
        out_flat = _build_embed_call(
            N, V, D, tn, table.dtype, vmem_limit, table_mode
        )(ids_2d, table)
        return out_flat.reshape(B, S, D)

    if single_buffer_table:
        # pl.Buffered(1): keep a single VMEM copy of the constant-index table
        # (halves its residency -- matters on v7x's 64 MiB VMEM at large V*D).
        # Fall back to default double-buffering if this jax/Mosaic build does
        # not accept buffer_count=1.
        try:
            return _run(pl.Buffered(1))
        except Exception:  # pragma: no cover - unsupported pipeline_mode
            pass
    return _run(None)


if __name__ == "__main__":
    # Module config (small, consistent with the forward pass)
    max_positions = 16
    embed_dim = 128
    B, S = 2, 8

    key = jax.random.PRNGKey(0)
    k_table, k_idx, k_idx2, k_idx3 = jax.random.split(key, 4)

    # nn.Embedding default init: weights ~ N(0, 1)
    table = jax.random.normal(
        k_table, (max_positions, embed_dim), dtype=jnp.float32
    )

    # 1) Basic check.
    x = jax.random.randint(k_idx, (B, S), 0, max_positions, dtype=jnp.int32)
    out = jax.block_until_ready(learned_positional_embedding(x, table))
    ref = table[x]
    assert out.shape == (B, S, embed_dim)
    assert jnp.allclose(out, ref, atol=1e-6), "mismatch vs reference gather"

    # 2) Ragged N (N % tile != 0) -> exercises the masked last-block store
    #    (no wrapper-side pad / slice any more).
    B2, S2 = 2, 5
    x2 = jax.random.randint(k_idx2, (B2, S2), 0, max_positions, dtype=jnp.int32)
    out2 = jax.block_until_ready(learned_positional_embedding(x2, table))
    assert out2.shape == (B2, S2, embed_dim)
    assert jnp.allclose(out2, table[x2], atol=1e-6), "mismatch (ragged N)"

    # 3) Multi-step grid + ragged last block (forced small tile).
    B3, S3 = 3, 7
    x3 = jax.random.randint(k_idx3, (B3, S3), 0, max_positions, dtype=jnp.int32)
    out3 = jax.block_until_ready(
        learned_positional_embedding(x3, table, tile_n=8)
    )
    assert out3.shape == (B3, S3, embed_dim)
    assert jnp.allclose(out3, table[x3], atol=1e-6), "mismatch (multi-tile ragged)"

    print("KERNEL_OK")
</pallas_src>

<mosaic_0001>
module attributes {stable_mosaic.version = 11 : i64} {
  func.func @_embed_kernel(%arg0: i32, %arg1: memref<16x1xi32, #tpu.memory_space<vmem>>, %arg2: memref<16x128xf32, #tpu.memory_space<vmem>>, %arg3: memref<16x128xf32, #tpu.memory_space<vmem>>) attributes {dimension_semantics = [#tpu.dimension_semantics<parallel>], iteration_bounds = array<i64: 1>, scalar_prefetch = 0 : i64, scratch_operands = 0 : i64, tpu.core_type = #tpu.core_type<tc>, window_params = [{transform_indices = @transform_0, window_bounds = array<i64: 16, 1>}, {pipeline_mode = #tpu.pipeline_mode<synchronous>, transform_indices = @transform_1, window_bounds = array<i64: 16, 128>}, {transform_indices = @transform_2, window_bounds = array<i64: 16, 128>}]} {
    %c0 = arith.constant 0 : index
    %c0_0 = arith.constant 0 : index
    %0 = vector.load %arg1[%c0, %c0_0] : memref<16x1xi32, #tpu.memory_space<vmem>>, vector<16x1xi32>
    %1 = tpu.iota {dimensions = array<i32: 1>} : vector<16x16xi32>
    %2 = vector.broadcast %0 : vector<16x1xi32> to vector<16x16xi32>
    %3 = arith.cmpi eq, %2, %1 : vector<16x16xi32>
    %4 = arith.extui %3 : vector<16x16xi1> to vector<16x16xi32>
    %5 = arith.sitofp %4 : vector<16x16xi32> to vector<16x16xf32>
    %c0_1 = arith.constant 0 : index
    %c0_2 = arith.constant 0 : index
    %6 = vector.load %arg2[%c0_1, %c0_2] : memref<16x128xf32, #tpu.memory_space<vmem>>, vector<16x128xf32>
    %cst = arith.constant dense<0.000000e+00> : vector<16x128xf32>
    %7 = tpu.matmul %5, %6, %cst {dimension_numbers = #tpu.dot_dimension_numbers<[1], [0], [0], [1], [0, 0, 1, 1], [], []>} : vector<16x16xf32>, vector<16x128xf32>, vector<16x128xf32> -> vector<16x128xf32>
    %c0_3 = arith.constant 0 : index
    %c0_4 = arith.constant 0 : index
    %8 = vector.load %arg3[%c0_3, %c0_4] : memref<16x128xf32, #tpu.memory_space<vmem>>, vector<16x128xf32>
    tpu.vector_store %arg3[%c0_3, %c0_4], %7 {strides = array<i32>} : memref<16x128xf32, #tpu.memory_space<vmem>>, vector<16x128xf32>,
    return
  }
  func.func @transform_0(%arg0: i32) -> (i32, i32) {
    %c0_i32 = arith.constant 0 : i32
    %c0_i32_0 = arith.constant 0 : i32
    return %arg0, %c0_i32 : i32, i32
  }
  func.func @transform_1(%arg0: i32) -> (i32, i32) {
    %c0_i32 = arith.constant 0 : i32
    %c0_i32_0 = arith.constant 0 : i32
    %c0_i32_1 = arith.constant 0 : i32
    return %c0_i32, %c0_i32_0 : i32, i32
  }
  func.func @transform_2(%arg0: i32) -> (i32, i32) {
    %c0_i32 = arith.constant 0 : i32
    %c0_i32_0 = arith.constant 0 : i32
    return %arg0, %c0_i32 : i32, i32
  }
}

module attributes {stable_mosaic.version = 11 : i64} {
  func.func @_embed_kernel(%arg0: i32, %arg1: memref<16x1xi32, #tpu.memory_space<vmem>>, %arg2: memref<16x128xf32, #tpu.memory_space<vmem>>, %arg3: memref<16x128xf32, #tpu.memory_space<vmem>>) attributes {dimension_semantics = [#tpu.dimension_semantics<parallel>], iteration_bounds = array<i64: 1>, scalar_prefetch = 0 : i64, scratch_operands = 0 : i64, tpu.core_type = #tpu.core_type<tc>, window_params = [{transform_indices = @transform_0, window_bounds = array<i64: 16, 1>}, {pipeline_mode = #tpu.pipeline_mode<synchronous>, transform_indices = @transform_1, window_bounds = array<i64: 16, 128>}, {transform_indices = @transform_2, window_bounds = array<i64: 16, 128>}]} {
    %c0 = arith.constant 0 : index
    %c0_0 = arith.constant 0 : index
    %0 = vector.load %arg1[%c0, %c0_0] : memref<16x1xi32, #tpu.memory_space<vmem>>, vector<16x1xi32>
    %1 = tpu.iota {dimensions = array<i32: 1>} : vector<16x16xi32>
    %2 = vector.broadcast %0 : vector<16x1xi32> to vector<16x16xi32>
    %3 = arith.cmpi eq, %2, %1 : vector<16x16xi32>
    %4 = arith.extui %3 : vector<16x16xi1> to vector<16x16xi32>
    %5 = arith.sitofp %4 : vector<16x16xi32> to vector<16x16xf32>
    %c0_1 = arith.constant 0 : index
    %c0_2 = arith.constant 0 : index
    %6 = vector.load %arg2[%c0_1, %c0_2] : memref<16x128xf32, #tpu.memory_space<vmem>>, vector<16x128xf32>
    %cst = arith.constant dense<0.000000e+00> : vector<16x128xf32>
    %7 = tpu.matmul %5, %6, %cst {dimension_numbers = #tpu.dot_dimension_numbers<[1], [0], [0], [1], [0, 0, 1, 1], [], []>} : vector<16x16xf32>, vector<16x128xf32>, vector<16x128xf32> -> vector<16x128xf32>
    %c0_3 = arith.constant 0 : index
    %c0_4 = arith.constant 0 : index
    %8 = vector.load %arg3[%c0_3, %c0_4] : memref<16x128xf32, #tpu.memory_space<vmem>>, vector<16x128xf32>
    tpu.vector_store %arg3[%c0_3, %c0_4], %7 {strides = array<i32>} : memref<16x128xf32, #tpu.memory_space<vmem>>, vector<16x128xf32>,
    return
  }
  func.func @transform_0(%arg0: i32) -> (i32, i32) {
    %c0_i32 = arith.constant 0 : i32
    %c0_i32_0 = arith.constant 0 : i32
    return %arg0, %c0_i32 : i32, i32
  }
  func.func @transform_1(%arg0: i32) -> (i32, i32) {
    %c0_i32 = arith.constant 0 : i32
    %c0_i32_0 = arith.constant 0 : i32
    %c0_i32_1 = arith.constant 0 : i32
    return %c0_i32, %c0_i32_0 : i32, i32
  }
  func.func @transform_2(%arg0: i32) -> (i32, i32) {
    %c0_i32 = arith.constant 0 : i32
    %c0_i32_0 = arith.constant 0 : i32
    return %arg0, %c0_i32 : i32, i32
  }
}

</mosaic_0001>

<llo_original>
// kernel: tpu_custom_call.1
$region0: #{tpu_custom_call.1}
  #allocation0 [shape = 'u32[]', space=smem, size = 0x4, offset = 0x4, fixed_abs, tag = 'smem constant byte address 0x4 - core index']
  #allocation1 [shape = 'u32[72,128]{1,0:T(1,128)}', space=vmem, size = 0x9000, scoped, tag = 'internal scratch']
  %s0 = inlined_call_operand.vmem [shape: s32[16,1], index: 0, kind: input, shape index: {}]
  %s1 = inlined_call_operand.vmem [shape: f32[16,128], index: 1, kind: input, shape index: {}]
  %s2 = inlined_call_operand.hbm [shape: f32[16,128], index: 2, kind: output, shape index: {}]
  %s3 = sld [smem:[#allocation0]]
  $region18: #{tpu_custom_call.1} parent=0
    _
  %s5 = ssub.s32 1, %s3
  %s6 = scalar_select 0, %s5, %s3
  $region1: #{tpu_custom_call.1} parent=0
    #allocation2 [shape = 'u8[8192]{0}', space=vmem, size = 0x2000, scoped, tag = 'output window, operand 0, single buffered']
    #allocation3 [shape = 's32[1]{0}', space=sflag, size = 0x4, scoped, tag = 'scoped memory for tpu_custom_call.1']
    %7 = vsyncpa [#allocation3], 0
    // Predicated region
    $region2: #{tpu_custom_call.1} parent=1 // pred_check
      _
    $region3: #{tpu_custom_call.1} parent=1 // pred_check_branch
      %9 = sbr.rel (0) target = $region5
    $region4: #{tpu_custom_call.1} parent=1 // pred_region
      _
    $region5: #{tpu_custom_call.1} parent=1 // pred_fallthru
      _
    // Predicated region
    $region6: #{tpu_custom_call.1} parent=1 // pred_check
      _
    $region7: #{tpu_custom_call.1} parent=1 // pred_check_branch
      %11 = sbr.rel (0) target = $region9
    $region8: #{tpu_custom_call.1} parent=1 // pred_region
      _
    $region9: #{tpu_custom_call.1} parent=1 // pred_fallthru
      _
    %v12 = vld [vmem:[%s0] sm:$0xff]
    %v13 = vld [vmem:[%s0 + $0x8] sm:$0xff]
    %v14 = vlaneseq
    %v15 = vand.u32 %v14, 127
    %16 = vset.pattern.permute.xlu0 0
    %17 = vperm.xlu0 %16, %v12
    %v18 = vpop.permute.xlu0 %17
    %19 = vset.pattern.permute.xlu0 0
    %20 = vperm.xlu0 %19, %v13
    %v21 = vpop.permute.xlu0 %20
    %vm22 = vcmp.eq.s32.totalorder %v18, %v15
    %vm23 = vcmp.eq.s32.totalorder %v21, %v15
    %v24 = vsel %vm22, 1, 0
    %v25 = vsel %vm23, 1, 0
    %v26 = vcvt.s32.f32 %v24
    %v27 = vcvt.s32.f32 %v25
    %v28 = vld [vmem:[%s1] sm:$0xff]
    %v29 = vld [vmem:[%s1 + $0x8] sm:$0xff]
    %vm30 = vcmask 130048
    %v32 = vsel %vm30, %v26, 0
    %v35 = vsel %vm30, %v27, 0
    %37 = vmatpush.msra.mxu0 0.0
    %38 = vmatpush.msra.mxu0 0.0
    %39 = vmatpush.msra.mxu0 0.0
    %40 = vmatpush.msra.mxu0 0.0
    %41 = vmatpush.msra.mxu0 0.0
    %42 = vmatpush.msra.mxu0 0.0
    %43 = vmatpush.msra.mxu0 0.0
    %44 = vmatpush.msra.mxu0 0.0
    %45 = vmatpush.msra.mxu0 0.0
    %46 = vmatpush.msra.mxu0 0.0
    %47 = vmatpush.msra.mxu0 0.0
    %48 = vmatpush.msra.mxu0 0.0
    %49 = vmatpush.msra.mxu0 0.0
    %50 = vmatpush.msra.mxu0 0.0
    %51 = vmatpush.msra.mxu0 %v29
    %52 = vmatpush.msra.mxu0 %v28
    %53 = vmatmul.f32.gmra.mxu0 %v32
    %v54 = vpop.f32.mrf.mxu0
    %v55 = vadd.f32 0.0, %v54
    %56 = vmatmul.f32.gmra.mxu0 %v35
    %v57 = vpop.f32.mrf.mxu0
    %v58 = vadd.f32 0.0, %v57
    %59 = vdwg.mxu0
    %60 = vst [vmem:[#allocation2] sm:$0xff] %v55
    %61 = vst [vmem:[#allocation2 + $0x8] sm:$0xff] %v58
    // Predicated region
    $region10: #{tpu_custom_call.1} parent=1 // pred_check
      _
    $region11: #{tpu_custom_call.1} parent=1 // pred_check_branch
      %63 = sbr.rel (0) target = $region13
    $region12: #{tpu_custom_call.1} parent=1 // pred_region
      %65 = vsyncadd [#allocation3], 0
      %s66 = sshll.u32 [#allocation2], 4
      %s67 = int_to_ptr.vmem [resolvable:$true] %s66
      %s68 = sshll.u32 %s2, 4
      %s69 = int_to_ptr.hbm [resolvable:$true] %s68
      %74 = dma.vmem_to_hbm [thread:$0]  %s67, 256, %s69, [#allocation3], 128, 128, 8
    $region13: #{tpu_custom_call.1} parent=1 // pred_fallthru
      _
    // Predicated region
    $region14: #{tpu_custom_call.1} parent=1 // pred_check
      _
    $region15: #{tpu_custom_call.1} parent=1 // pred_check_branch
      %76 = sbr.rel (0) target = $region17
    $region16: #{tpu_custom_call.1} parent=1 // pred_region
      %78 = dma.done [#allocation3], 256
    $region17: #{tpu_custom_call.1} parent=1 // pred_fallthru
      _
    %79 = vsyncpa [#allocation3], 1

// kernel: tpu_custom_call.1
$region0: #{tpu_custom_call.1}
  #allocation0 [shape = 'u32[]', space=smem, size = 0x4, offset = 0x4, fixed_abs, tag = 'smem constant byte address 0x4 - core index']
  #allocation1 [shape = 'u32[72,128]{1,0:T(1,128)}', space=vmem, size = 0x9000, scoped, tag = 'internal scratch']
  %s0 = inlined_call_operand.vmem [shape: s32[16,1], index: 0, kind: input, shape index: {}]
  %s1 = inlined_call_operand.vmem [shape: f32[16,128], index: 1, kind: input, shape index: {}]
  %s2 = inlined_call_operand.hbm [shape: f32[16,128], index: 2, kind: output, shape index: {}]
  %s3 = sld [smem:[#allocation0]]
  $region18: #{tpu_custom_call.1} parent=0
    _
  %s5 = ssub.s32 1, %s3
  %s6 = scalar_select 0, %s5, %s3
  $region1: #{tpu_custom_call.1} parent=0
    #allocation2 [shape = 'u8[8192]{0}', space=vmem, size = 0x2000, scoped, tag = 'output window, operand 0, single buffered']
    #allocation3 [shape = 's32[1]{0}', space=sflag, size = 0x4, scoped, tag = 'scoped memory for tpu_custom_call.1']
    %7 = vsyncpa [#allocation3], 0
    // Predicated region
    $region2: #{tpu_custom_call.1} parent=1 // pred_check
      _
    $region3: #{tpu_custom_call.1} parent=1 // pred_check_branch
      %9 = sbr.rel (0) target = $region5
    $region4: #{tpu_custom_call.1} parent=1 // pred_region
      _
    $region5: #{tpu_custom_call.1} parent=1 // pred_fallthru
      _
    // Predicated region
    $region6: #{tpu_custom_call.1} parent=1 // pred_check
      _
    $region7: #{tpu_custom_call.1} parent=1 // pred_check_branch
      %11 = sbr.rel (0) target = $region9
    $region8: #{tpu_custom_call.1} parent=1 // pred_region
      _
    $region9: #{tpu_custom_call.1} parent=1 // pred_fallthru
      _
    %v12 = vld [vmem:[%s0] sm:$0xff]
    %v13 = vld [vmem:[%s0 + $0x8] sm:$0xff]
    %v14 = vlaneseq
    %v15 = vand.u32 %v14, 127
    %16 = vset.pattern.permute.xlu0 0
    %17 = vperm.xlu0 %16, %v12
    %v18 = vpop.permute.xlu0 %17
    %19 = vset.pattern.permute.xlu0 0
    %20 = vperm.xlu0 %19, %v13
    %v21 = vpop.permute.xlu0 %20
    %vm22 = vcmp.eq.s32.totalorder %v18, %v15
    %vm23 = vcmp.eq.s32.totalorder %v21, %v15
    %v24 = vsel %vm22, 1, 0
    %v25 = vsel %vm23, 1, 0
    %v26 = vcvt.s32.f32 %v24
    %v27 = vcvt.s32.f32 %v25
    %v28 = vld [vmem:[%s1] sm:$0xff]
    %v29 = vld [vmem:[%s1 + $0x8] sm:$0xff]
    %vm30 = vcmask 130048
    %v32 = vsel %vm30, %v26, 0
    %v35 = vsel %vm30, %v27, 0
    %37 = vmatpush.msra.mxu0 0.0
    %38 = vmatpush.msra.mxu0 0.0
    %39 = vmatpush.msra.mxu0 0.0
    %40 = vmatpush.msra.mxu0 0.0
    %41 = vmatpush.msra.mxu0 0.0
    %42 = vmatpush.msra.mxu0 0.0
    %43 = vmatpush.msra.mxu0 0.0
    %44 = vmatpush.msra.mxu0 0.0
    %45 = vmatpush.msra.mxu0 0.0
    %46 = vmatpush.msra.mxu0 0.0
    %47 = vmatpush.msra.mxu0 0.0
    %48 = vmatpush.msra.mxu0 0.0
    %49 = vmatpush.msra.mxu0 0.0
    %50 = vmatpush.msra.mxu0 0.0
    %51 = vmatpush.msra.mxu0 %v29
    %52 = vmatpush.msra.mxu0 %v28
    %53 = vmatmul.f32.gmra.mxu0 %v32
    %v54 = vpop.f32.mrf.mxu0
    %v55 = vadd.f32 0.0, %v54
    %56 = vmatmul.f32.gmra.mxu0 %v35
    %v57 = vpop.f32.mrf.mxu0
    %v58 = vadd.f32 0.0, %v57
    %59 = vdwg.mxu0
    %60 = vst [vmem:[#allocation2] sm:$0xff] %v55
    %61 = vst [vmem:[#allocation2 + $0x8] sm:$0xff] %v58
    // Predicated region
    $region10: #{tpu_custom_call.1} parent=1 // pred_check
      _
    $region11: #{tpu_custom_call.1} parent=1 // pred_check_branch
      %63 = sbr.rel (0) target = $region13
    $region12: #{tpu_custom_call.1} parent=1 // pred_region
      %65 = vsyncadd [#allocation3], 0
      %s66 = sshll.u32 [#allocation2], 4
      %s67 = int_to_ptr.vmem [resolvable:$true] %s66
      %s68 = sshll.u32 %s2, 4
      %s69 = int_to_ptr.hbm [resolvable:$true] %s68
      %74 = dma.vmem_to_hbm [thread:$0]  %s67, 256, %s69, [#allocation3], 128, 128, 8
    $region13: #{tpu_custom_call.1} parent=1 // pred_fallthru
      _
    // Predicated region
    $region14: #{tpu_custom_call.1} parent=1 // pred_check
      _
    $region15: #{tpu_custom_call.1} parent=1 // pred_check_branch
      %76 = sbr.rel (0) target = $region17
    $region16: #{tpu_custom_call.1} parent=1 // pred_region
      %78 = dma.done [#allocation3], 256
    $region17: #{tpu_custom_call.1} parent=1 // pred_fallthru
      _
    %79 = vsyncpa [#allocation3], 1

</llo_original>
